<compile_context>
chip_gen: v7x
topology: tpu7x:2x2x1
jax: 0.10.0
libtpu: 0.0.40
codegen_flags: <defaults>
</compile_context>

<pallas_src>
import jax
import jax.numpy as jnp
from jax.experimental import pallas as pl
from jax.experimental.pallas import tpu as pltpu


def linear_clamp_kernel(y_ref, x_ref, w_ref, b_ref, tmin_ref, tmax_ref):
    # One MXU matmul (f32 accumulate) + bias + both clamps on the VPU,
    # all in a single VMEM pass; two lane-dense output stores.
    v = jnp.dot(x_ref[...], w_ref[...], preferred_element_type=jnp.float32)
    v = v + b_ref[...]
    y = y_ref[0]                       # scalar clamp threshold from SMEM
    tmin_ref[...] = jnp.maximum(v, y)  # torch.clamp_min(v1, y1)
    tmax_ref[...] = jnp.minimum(v, y)  # torch.clamp_max(v1, y1)


@jax.jit
def model_forward(x, w_io, b_row, y_arr):
    """x: (B, IN) f32; w_io: (IN, OUT) f32 (pre-transposed once);
    b_row: (1, OUT) f32; y_arr: (1,) f32.  Returns (clamp_min, clamp_max)."""
    B, IN = x.shape
    OUT = w_io.shape[1]
    bytes_accessed = (
        x.size * 4 + w_io.size * 4 + b_row.size * 4 + y_arr.size * 4
        + 2 * B * OUT * 4
    )
    t1, v2 = pl.pallas_call(
        linear_clamp_kernel,
        out_shape=(
            jax.ShapeDtypeStruct((B, OUT), jnp.float32),   # clamp_min result
            jax.ShapeDtypeStruct((B, OUT), jnp.float32),   # clamp_max result
        ),
        in_specs=[
            pl.BlockSpec(memory_space=pltpu.SMEM),   # y1 scalar
            pl.BlockSpec(memory_space=pltpu.VMEM),   # x (full block)
            pl.BlockSpec(memory_space=pltpu.VMEM),   # weight (IN, OUT)
            pl.BlockSpec(memory_space=pltpu.VMEM),   # bias (1, OUT)
        ],
        out_specs=(
            pl.BlockSpec(memory_space=pltpu.VMEM),
            pl.BlockSpec(memory_space=pltpu.VMEM),
        ),
        cost_estimate=pl.CostEstimate(
            flops=2 * B * IN * OUT,
            transcendentals=0,
            bytes_accessed=bytes_accessed,
        ),
    )(y_arr, x, w_io, b_row)
    return t1, v2


if __name__ == "__main__":
    key = jax.random.PRNGKey(0)
    kx, kw, kb = jax.random.split(key, 3)

    IN, OUT = 512, 1024
    B = 1

    # Deterministic parameter init (mimics nn.Linear uniform(-1/sqrt(IN), 1/sqrt(IN))).
    bound = 1.0 / jnp.sqrt(jnp.float32(IN))
    w = jax.random.uniform(kw, (OUT, IN), jnp.float32, -bound, bound)   # torch layout
    b = jax.random.uniform(kb, (OUT,), jnp.float32, -bound, bound)

    x1 = jax.random.normal(kx, (B, IN), jnp.float32)
    y1 = 1.0   # original module passes y1 = 1

    # --- One-time parameter prep OUTSIDE the jitted hot path ---
    w_io = jax.device_put(jnp.asarray(w.T))            # (IN, OUT) f32, pre-transposed
    b_row = jax.device_put(b.reshape(1, OUT))
    y_arr = jnp.asarray([y1], dtype=jnp.float32)

    t1, v2 = model_forward(x1, w_io, b_row, y_arr)
    jax.block_until_ready((t1, v2))

    # Plain-JAX f32 reference (same MXU default precision class; tolerance
    # covers accumulation-order differences).
    v_ref = x1 @ w_io + b_row
    t1_ref = jnp.maximum(v_ref, y1)
    v2_ref = jnp.minimum(v_ref, y1)
    assert t1.shape == (B, OUT) and v2.shape == (B, OUT)
    assert jnp.allclose(t1, t1_ref, atol=1e-2, rtol=1e-2)
    assert jnp.allclose(v2, v2_ref, atol=1e-2, rtol=1e-2)

    print("KERNEL_OK")
</pallas_src>

<mosaic_0001>
module attributes {stable_mosaic.version = 11 : i64} {
  func.func @linear_clamp_kernel(%arg0: memref<1xf32, #tpu.memory_space<smem>>, %arg1: memref<1x512xf32, #tpu.memory_space<vmem>>, %arg2: memref<512x1024xf32, #tpu.memory_space<vmem>>, %arg3: memref<1x1024xf32, #tpu.memory_space<vmem>>, %arg4: memref<1x1024xf32, #tpu.memory_space<vmem>>, %arg5: memref<1x1024xf32, #tpu.memory_space<vmem>>) attributes {dimension_semantics = [], scalar_prefetch = 0 : i64, scratch_operands = 0 : i64, tpu.core_type = #tpu.core_type<tc>} {
    %c0 = arith.constant 0 : index
    %c0_0 = arith.constant 0 : index
    %0 = vector.load %arg1[%c0, %c0_0] : memref<1x512xf32, #tpu.memory_space<vmem>>, vector<1x512xf32>
    %c0_1 = arith.constant 0 : index
    %c0_2 = arith.constant 0 : index
    %1 = vector.load %arg2[%c0_1, %c0_2] : memref<512x1024xf32, #tpu.memory_space<vmem>>, vector<512x1024xf32>
    %cst = arith.constant dense<0.000000e+00> : vector<1x1024xf32>
    %2 = tpu.matmul %0, %1, %cst {dimension_numbers = #tpu.dot_dimension_numbers<[1], [0], [0], [1], [0, 0, 1, 1], [], []>} : vector<1x512xf32>, vector<512x1024xf32>, vector<1x1024xf32> -> vector<1x1024xf32>
    %c0_3 = arith.constant 0 : index
    %c0_4 = arith.constant 0 : index
    %3 = vector.load %arg3[%c0_3, %c0_4] : memref<1x1024xf32, #tpu.memory_space<vmem>>, vector<1x1024xf32>
    %4 = arith.addf %2, %3 : vector<1x1024xf32>
    %c0_5 = arith.constant 0 : index
    %5 = memref.load %arg0[%c0_5] : memref<1xf32, #tpu.memory_space<smem>>
    %6 = vector.broadcast %5 : f32 to vector<1x1024xf32>
    %7 = arith.maximumf %4, %6 : vector<1x1024xf32>
    %c0_6 = arith.constant 0 : index
    %c0_7 = arith.constant 0 : index
    %8 = vector.load %arg4[%c0_6, %c0_7] : memref<1x1024xf32, #tpu.memory_space<vmem>>, vector<1x1024xf32>
    tpu.vector_store %arg4[%c0_6, %c0_7], %7 {strides = array<i32>} : memref<1x1024xf32, #tpu.memory_space<vmem>>, vector<1x1024xf32>,
    %9 = vector.broadcast %5 : f32 to vector<1x1024xf32>
    %10 = arith.minimumf %4, %9 : vector<1x1024xf32>
    %c0_8 = arith.constant 0 : index
    %c0_9 = arith.constant 0 : index
    %11 = vector.load %arg5[%c0_8, %c0_9] : memref<1x1024xf32, #tpu.memory_space<vmem>>, vector<1x1024xf32>
    tpu.vector_store %arg5[%c0_8, %c0_9], %10 {strides = array<i32>} : memref<1x1024xf32, #tpu.memory_space<vmem>>, vector<1x1024xf32>,
    return
  }
}

</mosaic_0001>

<llo_original>
// kernel: model_forward.1
$region0: #{model_forward.1}
  #allocation0 [shape = 'u32[]', space=smem, size = 0x4, offset = 0x4, fixed_abs, tag = 'smem constant byte address 0x4 - core index']
  #allocation1 [shape = 'u32[144,128]{1,0:T(1,128)}', space=vmem, size = 0x12000, scoped, tag = 'internal scratch']
  #allocation2 [shape = 'f32[1]{0:T(128)S(6)}', space=smem, size = 0x200, scoped, tag = 'scoped memory for model_forward.1']
  %s0 = inlined_call_operand.<no memory space> [shape: f32[1], index: 0, kind: input, shape index: {}]
  %s1 = inlined_call_operand.hbm [shape: f32[1,512], index: 1, kind: input, shape index: {}]
  %s2 = inlined_call_operand.hbm [shape: f32[512,1024], index: 2, kind: input, shape index: {}]
  %s3 = inlined_call_operand.hbm [shape: f32[1,1024], index: 3, kind: input, shape index: {}]
  %s4 = inlined_call_operand.hbm [shape: f32[1,1024], index: 4, kind: output, shape index: {0}]
  %s5 = inlined_call_operand.hbm [shape: f32[1,1024], index: 5, kind: output, shape index: {1}]
  %6 = xla_tuple %s4, %s5
  %s7 = sld [smem:[#allocation0]]
  $region46: #{model_forward.1} parent=0
    _
  %s9 = ssub.s32 1, %s7
  %s10 = scalar_select 0, %s9, %s7
  %11 = sst [smem:[#allocation2]] %s0
  $region1: #{model_forward.1} parent=0
    #allocation3 [shape = 'u8[2048]{0}', space=vmem, size = 0x800, scoped, tag = 'input window, operand 1, single buffered']
    #allocation4 [shape = 's32[1]{0}', space=sflag, size = 0x4, scoped, tag = 'scoped memory for model_forward.1']
    #allocation5 [shape = 's32[1]{0}', space=sflag, size = 0x4, scoped, tag = 'scoped memory for model_forward.1']
    #allocation6 [shape = 'u8[2097152]{0}', space=vmem, size = 0x200000, scoped, tag = 'input window, operand 2, single buffered']
    #allocation7 [shape = 's32[1]{0}', space=sflag, size = 0x4, scoped, tag = 'scoped memory for model_forward.1']
    #allocation8 [shape = 'u8[4096]{0}', space=vmem, size = 0x1000, scoped, tag = 'input window, operand 3, single buffered']
    #allocation9 [shape = 'u8[4096]{0}', space=vmem, size = 0x1000, scoped, tag = 'output window, operand 0, single buffered']
    #allocation10 [shape = 'u8[4096]{0}', space=vmem, size = 0x1000, scoped, tag = 'output window, operand 1, single buffered']
    #allocation11 [shape = 's32[1]{0}', space=sflag, size = 0x4, scoped, tag = 'scoped memory for model_forward.1']
    %12 = vsyncpa [#allocation4], 0
    %13 = vsyncpa [#allocation7], 0
    %14 = vsyncpa [#allocation5], 0
    %15 = vsyncpa [#allocation11], 0
    // Predicated region
    $region2: #{model_forward.1} parent=1 // pred_check
      _
    $region3: #{model_forward.1} parent=1 // pred_check_branch
      %17 = sbr.rel (0) target = $region5
    $region4: #{model_forward.1} parent=1 // pred_region
      _
    $region5: #{model_forward.1} parent=1 // pred_fallthru
      _
    // Predicated region
    $region6: #{model_forward.1} parent=1 // pred_check
      _
    $region7: #{model_forward.1} parent=1 // pred_check_branch
      %19 = sbr.rel (0) target = $region9
    $region8: #{model_forward.1} parent=1 // pred_region
      %s21 = ssub.s32 64, 64
      %22 = vsyncadd [#allocation4], %s21
      %s24 = sshll.u32 [#allocation3], 4
      %s25 = int_to_ptr.vmem [resolvable:$true] %s24
      %27 = dma.hbm_to_vmem [thread:$0]  %s1, 64, %s25, [#allocation4]
    $region9: #{model_forward.1} parent=1 // pred_fallthru
      _
    // Predicated region
    $region10: #{model_forward.1} parent=1 // pred_check
      _
    $region11: #{model_forward.1} parent=1 // pred_check_branch
      %29 = sbr.rel (0) target = $region13
    $region12: #{model_forward.1} parent=1 // pred_region
      %s31 = ssub.s32 65536, 65536
      %32 = vsyncadd [#allocation7], %s31
      %s33 = sshll.u32 [#allocation6], 4
      %s34 = int_to_ptr.vmem [resolvable:$true] %s33
      %39 = dma.hbm_to_vmem [thread:$0]  %s2, 65536, %s34, [#allocation7], 1024, 1024, 64
    $region13: #{model_forward.1} parent=1 // pred_fallthru
      _
    // Predicated region
    $region14: #{model_forward.1} parent=1 // pred_check
      _
    $region15: #{model_forward.1} parent=1 // pred_check_branch
      %41 = sbr.rel (0) target = $region17
    $region16: #{model_forward.1} parent=1 // pred_region
      %s43 = ssub.s32 128, 128
      %44 = vsyncadd [#allocation7], %s43
      %s46 = sshll.u32 [#allocation8], 4
      %s47 = int_to_ptr.vmem [resolvable:$true] %s46
      %49 = dma.hbm_to_vmem [thread:$0]  %s3, 128, %s47, [#allocation7]
    $region17: #{model_forward.1} parent=1 // pred_fallthru
      _
    // Predicated region
    $region18: #{model_forward.1} parent=1 // pred_check
      _
    $region19: #{model_forward.1} parent=1 // pred_check_branch
      %51 = sbr.rel (0) target = $region21
    $region20: #{model_forward.1} parent=1 // pred_region
      %52 = dma.done [#allocation4], 64
    $region21: #{model_forward.1} parent=1 // pred_fallthru
      _
    // Predicated region
    $region22: #{model_forward.1} parent=1 // pred_check
      _
    $region23: #{model_forward.1} parent=1 // pred_check_branch
      %54 = sbr.rel (0) target = $region25
    $region24: #{model_forward.1} parent=1 // pred_region
      %55 = dma.done [#allocation7], 65536
    $region25: #{model_forward.1} parent=1 // pred_fallthru
      _
    // Predicated region
    $region26: #{model_forward.1} parent=1 // pred_check
      _
    $region27: #{model_forward.1} parent=1 // pred_check_branch
      %57 = sbr.rel (0) target = $region29
    $region28: #{model_forward.1} parent=1 // pred_region
      %58 = dma.done [#allocation7], 128
    $region29: #{model_forward.1} parent=1 // pred_fallthru
      _
    %v59 = vld [vmem:[#allocation3] sm:$0xf]
    %v60 = vld [vmem:[#allocation6] sm:$0xff]
    %v61 = vld [vmem:[#allocation6 + $0x8] sm:$0xff]
    %v62 = vld [vmem:[#allocation6 + $0x10] sm:$0xff]
    %v63 = vld [vmem:[#allocation6 + $0x18] sm:$0xff]
    %v64 = vld [vmem:[#allocation6 + $0x20] sm:$0xff]
    %v65 = vld [vmem:[#allocation6 + $0x28] sm:$0xff]
    %v66 = vld [vmem:[#allocation6 + $0x30] sm:$0xff]
    %v67 = vld [vmem:[#allocation6 + $0x38] sm:$0xff]
    %v68 = vld [vmem:[#allocation6 + $0x40] sm:$0xff]
    %v69 = vld [vmem:[#allocation6 + $0x48] sm:$0xff]
    %v70 = vld [vmem:[#allocation6 + $0x50] sm:$0xff]
    %v71 = vld [vmem:[#allocation6 + $0x58] sm:$0xff]
    %v72 = vld [vmem:[#allocation6 + $0x60] sm:$0xff]
    %v73 = vld [vmem:[#allocation6 + $0x68] sm:$0xff]
    %v74 = vld [vmem:[#allocation6 + $0x70] sm:$0xff]
    %v75 = vld [vmem:[#allocation6 + $0x78] sm:$0xff]
    %v76 = vld [vmem:[#allocation6 + $0x80] sm:$0xff]
    %v77 = vld [vmem:[#allocation6 + $0x88] sm:$0xff]
    %v78 = vld [vmem:[#allocation6 + $0x90] sm:$0xff]
    %v79 = vld [vmem:[#allocation6 + $0x98] sm:$0xff]
    %v80 = vld [vmem:[#allocation6 + $0xa0] sm:$0xff]
    %v81 = vld [vmem:[#allocation6 + $0xa8] sm:$0xff]
    %v82 = vld [vmem:[#allocation6 + $0xb0] sm:$0xff]
    %v83 = vld [vmem:[#allocation6 + $0xb8] sm:$0xff]
    %v84 = vld [vmem:[#allocation6 + $0xc0] sm:$0xff]
    %v85 = vld [vmem:[#allocation6 + $0xc8] sm:$0xff]
    %v86 = vld [vmem:[#allocation6 + $0xd0] sm:$0xff]
    %v87 = vld [vmem:[#allocation6 + $0xd8] sm:$0xff]
    %v88 = vld [vmem:[#allocation6 + $0xe0] sm:$0xff]
    %v89 = vld [vmem:[#allocation6 + $0xe8] sm:$0xff]
    %v90 = vld [vmem:[#allocation6 + $0xf0] sm:$0xff]
    %v91 = vld [vmem:[#allocation6 + $0xf8] sm:$0xff]
    %v92 = vld [vmem:[#allocation6 + $0x100] sm:$0xff]
    %v93 = vld [vmem:[#allocation6 + $0x108] sm:$0xff]
    %v94 = vld [vmem:[#allocation6 + $0x110] sm:$0xff]
    %v95 = vld [vmem:[#allocation6 + $0x118] sm:$0xff]
    %v96 = vld [vmem:[#allocation6 + $0x120] sm:$0xff]
    %v97 = vld [vmem:[#allocation6 + $0x128] sm:$0xff]
    %v98 = vld [vmem:[#allocation6 + $0x130] sm:$0xff]
    %v99 = vld [vmem:[#allocation6 + $0x138] sm:$0xff]
    %v100 = vld [vmem:[#allocation6 + $0x140] sm:$0xff]
    %v101 = vld [vmem:[#allocation6 + $0x148] sm:$0xff]
    %v102 = vld [vmem:[#allocation6 + $0x150] sm:$0xff]
    %v103 = vld [vmem:[#allocation6 + $0x158] sm:$0xff]
    %v104 = vld [vmem:[#allocation6 + $0x160] sm:$0xff]
    %v105 = vld [vmem:[#allocation6 + $0x168] sm:$0xff]
    %v106 = vld [vmem:[#allocation6 + $0x170] sm:$0xff]
    %v107 = vld [vmem:[#allocation6 + $0x178] sm:$0xff]
    %v108 = vld [vmem:[#allocation6 + $0x180] sm:$0xff]
    %v109 = vld [vmem:[#allocation6 + $0x188] sm:$0xff]
    %v110 = vld [vmem:[#allocation6 + $0x190] sm:$0xff]
    %v111 = vld [vmem:[#allocation6 + $0x198] sm:$0xff]
    %v112 = vld [vmem:[#allocation6 + $0x1a0] sm:$0xff]
    %v113 = vld [vmem:[#allocation6 + $0x1a8] sm:$0xff]
    %v114 = vld [vmem:[#allocation6 + $0x1b0] sm:$0xff]
    %v115 = vld [vmem:[#allocation6 + $0x1b8] sm:$0xff]
    %v116 = vld [vmem:[#allocation6 + $0x1c0] sm:$0xff]
    %v117 = vld [vmem:[#allocation6 + $0x1c8] sm:$0xff]
    %v118 = vld [vmem:[#allocation6 + $0x1d0] sm:$0xff]
    %v119 = vld [vmem:[#allocation6 + $0x1d8] sm:$0xff]
    %v120 = vld [vmem:[#allocation6 + $0x1e0] sm:$0xff]
    %v121 = vld [vmem:[#allocation6 + $0x1e8] sm:$0xff]
    %v122 = vld [vmem:[#allocation6 + $0x1f0] sm:$0xff]
    %v123 = vld [vmem:[#allocation6 + $0x1f8] sm:$0xff]
    %v124 = vld [vmem:[#allocation6 + $0x200] sm:$0xff]
    %v125 = vld [vmem:[#allocation6 + $0x208] sm:$0xff]
    %v126 = vld [vmem:[#allocation6 + $0x210] sm:$0xff]
    %v127 = vld [vmem:[#allocation6 + $0x218] sm:$0xff]
    %v128 = vld [vmem:[#allocation6 + $0x220] sm:$0xff]
    %v129 = vld [vmem:[#allocation6 + $0x228] sm:$0xff]
    %v130 = vld [vmem:[#allocation6 + $0x230] sm:$0xff]
    %v131 = vld [vmem:[#allocation6 + $0x238] sm:$0xff]
    %v132 = vld [vmem:[#allocation6 + $0x240] sm:$0xff]
    %v133 = vld [vmem:[#allocation6 + $0x248] sm:$0xff]
    %v134 = vld [vmem:[#allocation6 + $0x250] sm:$0xff]
    %v135 = vld [vmem:[#allocation6 + $0x258] sm:$0xff]
    %v136 = vld [vmem:[#allocation6 + $0x260] sm:$0xff]
    %v137 = vld [vmem:[#allocation6 + $0x268] sm:$0xff]
    %v138 = vld [vmem:[#allocation6 + $0x270] sm:$0xff]
    %v139 = vld [vmem:[#allocation6 + $0x278] sm:$0xff]
    %v140 = vld [vmem:[#allocation6 + $0x280] sm:$0xff]
    %v141 = vld [vmem:[#allocation6 + $0x288] sm:$0xff]
    %v142 = vld [vmem:[#allocation6 + $0x290] sm:$0xff]
    %v143 = vld [vmem:[#allocation6 + $0x298] sm:$0xff]
    %v144 = vld [vmem:[#allocation6 + $0x2a0] sm:$0xff]
    %v145 = vld [vmem:[#allocation6 + $0x2a8] sm:$0xff]
    %v146 = vld [vmem:[#allocation6 + $0x2b0] sm:$0xff]
    %v147 = vld [vmem:[#allocation6 + $0x2b8] sm:$0xff]
    %v148 = vld [vmem:[#allocation6 + $0x2c0] sm:$0xff]
    %v149 = vld [vmem:[#allocation6 + $0x2c8] sm:$0xff]
    %v150 = vld [vmem:[#allocation6 + $0x2d0] sm:$0xff]
    %v151 = vld [vmem:[#allocation6 + $0x2d8] sm:$0xff]
    %v152 = vld [vmem:[#allocation6 + $0x2e0] sm:$0xff]
    %v153 = vld [vmem:[#allocation6 + $0x2e8] sm:$0xff]
    %v154 = vld [vmem:[#allocation6 + $0x2f0] sm:$0xff]
    %v155 = vld [vmem:[#allocation6 + $0x2f8] sm:$0xff]
    %v156 = vld [vmem:[#allocation6 + $0x300] sm:$0xff]
    %v157 = vld [vmem:[#allocation6 + $0x308] sm:$0xff]
    %v158 = vld [vmem:[#allocation6 + $0x310] sm:$0xff]
    %v159 = vld [vmem:[#allocation6 + $0x318] sm:$0xff]
    %v160 = vld [vmem:[#allocation6 + $0x320] sm:$0xff]
    %v161 = vld [vmem:[#allocation6 + $0x328] sm:$0xff]
    %v162 = vld [vmem:[#allocation6 + $0x330] sm:$0xff]
    %v163 = vld [vmem:[#allocation6 + $0x338] sm:$0xff]
    %v164 = vld [vmem:[#allocation6 + $0x340] sm:$0xff]
    %v165 = vld [vmem:[#allocation6 + $0x348] sm:$0xff]
    %v166 = vld [vmem:[#allocation6 + $0x350] sm:$0xff]
    %v167 = vld [vmem:[#allocation6 + $0x358] sm:$0xff]
    %v168 = vld [vmem:[#allocation6 + $0x360] sm:$0xff]
    %v169 = vld [vmem:[#allocation6 + $0x368] sm:$0xff]
    %v170 = vld [vmem:[#allocation6 + $0x370] sm:$0xff]
    %v171 = vld [vmem:[#allocation6 + $0x378] sm:$0xff]
    %v172 = vld [vmem:[#allocation6 + $0x380] sm:$0xff]
    %v173 = vld [vmem:[#allocation6 + $0x388] sm:$0xff]
    %v174 = vld [vmem:[#allocation6 + $0x390] sm:$0xff]
    %v175 = vld [vmem:[#allocation6 + $0x398] sm:$0xff]
    %v176 = vld [vmem:[#allocation6 + $0x3a0] sm:$0xff]
    %v177 = vld [vmem:[#allocation6 + $0x3a8] sm:$0xff]
    %v178 = vld [vmem:[#allocation6 + $0x3b0] sm:$0xff]
    %v179 = vld [vmem:[#allocation6 + $0x3b8] sm:$0xff]
    %v180 = vld [vmem:[#allocation6 + $0x3c0] sm:$0xff]
    %v181 = vld [vmem:[#allocation6 + $0x3c8] sm:$0xff]
    %v182 = vld [vmem:[#allocation6 + $0x3d0] sm:$0xff]
    %v183 = vld [vmem:[#allocation6 + $0x3d8] sm:$0xff]
    %v184 = vld [vmem:[#allocation6 + $0x3e0] sm:$0xff]
    %v185 = vld [vmem:[#allocation6 + $0x3e8] sm:$0xff]
    %v186 = vld [vmem:[#allocation6 + $0x3f0] sm:$0xff]
    %v187 = vld [vmem:[#allocation6 + $0x3f8] sm:$0xff]
    %v188 = vld [vmem:[#allocation6 + $0x400] sm:$0xff]
    %v189 = vld [vmem:[#allocation6 + $0x408] sm:$0xff]
    %v190 = vld [vmem:[#allocation6 + $0x410] sm:$0xff]
    %v191 = vld [vmem:[#allocation6 + $0x418] sm:$0xff]
    %v192 = vld [vmem:[#allocation6 + $0x420] sm:$0xff]
    %v193 = vld [vmem:[#allocation6 + $0x428] sm:$0xff]
    %v194 = vld [vmem:[#allocation6 + $0x430] sm:$0xff]
    %v195 = vld [vmem:[#allocation6 + $0x438] sm:$0xff]
    %v196 = vld [vmem:[#allocation6 + $0x440] sm:$0xff]
    %v197 = vld [vmem:[#allocation6 + $0x448] sm:$0xff]
    %v198 = vld [vmem:[#allocation6 + $0x450] sm:$0xff]
    %v199 = vld [vmem:[#allocation6 + $0x458] sm:$0xff]
    %v200 = vld [vmem:[#allocation6 + $0x460] sm:$0xff]
    %v201 = vld [vmem:[#allocation6 + $0x468] sm:$0xff]
    %v202 = vld [vmem:[#allocation6 + $0x470] sm:$0xff]
    %v203 = vld [vmem:[#allocation6 + $0x478] sm:$0xff]
    %v204 = vld [vmem:[#allocation6 + $0x480] sm:$0xff]
    %v205 = vld [vmem:[#allocation6 + $0x488] sm:$0xff]
    %v206 = vld [vmem:[#allocation6 + $0x490] sm:$0xff]
    %v207 = vld [vmem:[#allocation6 + $0x498] sm:$0xff]
    %v208 = vld [vmem:[#allocation6 + $0x4a0] sm:$0xff]
    %v209 = vld [vmem:[#allocation6 + $0x4a8] sm:$0xff]
    %v210 = vld [vmem:[#allocation6 + $0x4b0] sm:$0xff]
    %v211 = vld [vmem:[#allocation6 + $0x4b8] sm:$0xff]
    %v212 = vld [vmem:[#allocation6 + $0x4c0] sm:$0xff]
    %v213 = vld [vmem:[#allocation6 + $0x4c8] sm:$0xff]
    %v214 = vld [vmem:[#allocation6 + $0x4d0] sm:$0xff]
    %v215 = vld [vmem:[#allocation6 + $0x4d8] sm:$0xff]
    %v216 = vld [vmem:[#allocation6 + $0x4e0] sm:$0xff]
    %v217 = vld [vmem:[#allocation6 + $0x4e8] sm:$0xff]
    %v218 = vld [vmem:[#allocation6 + $0x4f0] sm:$0xff]
    %v219 = vld [vmem:[#allocation6 + $0x4f8] sm:$0xff]
    %v220 = vld [vmem:[#allocation6 + $0x500] sm:$0xff]
    %v221 = vld [vmem:[#allocation6 + $0x508] sm:$0xff]
    %v222 = vld [vmem:[#allocation6 + $0x510] sm:$0xff]
    %v223 = vld [vmem:[#allocation6 + $0x518] sm:$0xff]
    %v224 = vld [vmem:[#allocation6 + $0x520] sm:$0xff]
    %v225 = vld [vmem:[#allocation6 + $0x528] sm:$0xff]
    %v226 = vld [vmem:[#allocation6 + $0x530] sm:$0xff]
    %v227 = vld [vmem:[#allocation6 + $0x538] sm:$0xff]
    %v228 = vld [vmem:[#allocation6 + $0x540] sm:$0xff]
    %v229 = vld [vmem:[#allocation6 + $0x548] sm:$0xff]
    %v230 = vld [vmem:[#allocation6 + $0x550] sm:$0xff]
    %v231 = vld [vmem:[#allocation6 + $0x558] sm:$0xff]
    %v232 = vld [vmem:[#allocation6 + $0x560] sm:$0xff]
    %v233 = vld [vmem:[#allocation6 + $0x568] sm:$0xff]
    %v234 = vld [vmem:[#allocation6 + $0x570] sm:$0xff]
    %v235 = vld [vmem:[#allocation6 + $0x578] sm:$0xff]
    %v236 = vld [vmem:[#allocation6 + $0x580] sm:$0xff]
    %v237 = vld [vmem:[#allocation6 + $0x588] sm:$0xff]
    %v238 = vld [vmem:[#allocation6 + $0x590] sm:$0xff]
    %v239 = vld [vmem:[#allocation6 + $0x598] sm:$0xff]
    %v240 = vld [vmem:[#allocation6 + $0x5a0] sm:$0xff]
    %v241 = vld [vmem:[#allocation6 + $0x5a8] sm:$0xff]
    %v242 = vld [vmem:[#allocation6 + $0x5b0] sm:$0xff]
    %v243 = vld [vmem:[#allocation6 + $0x5b8] sm:$0xff]
    %v244 = vld [vmem:[#allocation6 + $0x5c0] sm:$0xff]
    %v245 = vld [vmem:[#allocation6 + $0x5c8] sm:$0xff]
    %v246 = vld [vmem:[#allocation6 + $0x5d0] sm:$0xff]
    %v247 = vld [vmem:[#allocation6 + $0x5d8] sm:$0xff]
    %v248 = vld [vmem:[#allocation6 + $0x5e0] sm:$0xff]
    %v249 = vld [vmem:[#allocation6 + $0x5e8] sm:$0xff]
    %v250 = vld [vmem:[#allocation6 + $0x5f0] sm:$0xff]
    %v251 = vld [vmem:[#allocation6 + $0x5f8] sm:$0xff]
    %v252 = vld [vmem:[#allocation6 + $0x600] sm:$0xff]
    %v253 = vld [vmem:[#allocation6 + $0x608] sm:$0xff]
    %v254 = vld [vmem:[#allocation6 + $0x610] sm:$0xff]
    %v255 = vld [vmem:[#allocation6 + $0x618] sm:$0xff]
    %v256 = vld [vmem:[#allocation6 + $0x620] sm:$0xff]
    %v257 = vld [vmem:[#allocation6 + $0x628] sm:$0xff]
    %v258 = vld [vmem:[#allocation6 + $0x630] sm:$0xff]
    %v259 = vld [vmem:[#allocation6 + $0x638] sm:$0xff]
    %v260 = vld [vmem:[#allocation6 + $0x640] sm:$0xff]
    %v261 = vld [vmem:[#allocation6 + $0x648] sm:$0xff]
    %v262 = vld [vmem:[#allocation6 + $0x650] sm:$0xff]
    %v263 = vld [vmem:[#allocation6 + $0x658] sm:$0xff]
    %v264 = vld [vmem:[#allocation6 + $0x660] sm:$0xff]
    %v265 = vld [vmem:[#allocation6 + $0x668] sm:$0xff]
    %v266 = vld [vmem:[#allocation6 + $0x670] sm:$0xff]
    %v267 = vld [vmem:[#allocation6 + $0x678] sm:$0xff]
    %v268 = vld [vmem:[#allocation6 + $0x680] sm:$0xff]
    %v269 = vld [vmem:[#allocation6 + $0x688] sm:$0xff]
    %v270 = vld [vmem:[#allocation6 + $0x690] sm:$0xff]
    %v271 = vld [vmem:[#allocation6 + $0x698] sm:$0xff]
    %v272 = vld [vmem:[#allocation6 + $0x6a0] sm:$0xff]
    %v273 = vld [vmem:[#allocation6 + $0x6a8] sm:$0xff]
    %v274 = vld [vmem:[#allocation6 + $0x6b0] sm:$0xff]
    %v275 = vld [vmem:[#allocation6 + $0x6b8] sm:$0xff]
    %v276 = vld [vmem:[#allocation6 + $0x6c0] sm:$0xff]
    %v277 = vld [vmem:[#allocation6 + $0x6c8] sm:$0xff]
    %v278 = vld [vmem:[#allocation6 + $0x6d0] sm:$0xff]
    %v279 = vld [vmem:[#allocation6 + $0x6d8] sm:$0xff]
    %v280 = vld [vmem:[#allocation6 + $0x6e0] sm:$0xff]
    %v281 = vld [vmem:[#allocation6 + $0x6e8] sm:$0xff]
    %v282 = vld [vmem:[#allocation6 + $0x6f0] sm:$0xff]
    %v283 = vld [vmem:[#allocation6 + $0x6f8] sm:$0xff]
    %v284 = vld [vmem:[#allocation6 + $0x700] sm:$0xff]
    %v285 = vld [vmem:[#allocation6 + $0x708] sm:$0xff]
    %v286 = vld [vmem:[#allocation6 + $0x710] sm:$0xff]
    %v287 = vld [vmem:[#allocation6 + $0x718] sm:$0xff]
    %v288 = vld [vmem:[#allocation6 + $0x720] sm:$0xff]
    %v289 = vld [vmem:[#allocation6 + $0x728] sm:$0xff]
    %v290 = vld [vmem:[#allocation6 + $0x730] sm:$0xff]
    %v291 = vld [vmem:[#allocation6 + $0x738] sm:$0xff]
    %v292 = vld [vmem:[#allocation6 + $0x740] sm:$0xff]
    %v293 = vld [vmem:[#allocation6 + $0x748] sm:$0xff]
    %v294 = vld [vmem:[#allocation6 + $0x750] sm:$0xff]
    %v295 = vld [vmem:[#allocation6 + $0x758] sm:$0xff]
    %v296 = vld [vmem:[#allocation6 + $0x760] sm:$0xff]
    %v297 = vld [vmem:[#allocation6 + $0x768] sm:$0xff]
    %v298 = vld [vmem:[#allocation6 + $0x770] sm:$0xff]
    %v299 = vld [vmem:[#allocation6 + $0x778] sm:$0xff]
    %v300 = vld [vmem:[#allocation6 + $0x780] sm:$0xff]
    %v301 = vld [vmem:[#allocation6 + $0x788] sm:$0xff]
    %v302 = vld [vmem:[#allocation6 + $0x790] sm:$0xff]
    %v303 = vld [vmem:[#allocation6 + $0x798] sm:$0xff]
    %v304 = vld [vmem:[#allocation6 + $0x7a0] sm:$0xff]
    %v305 = vld [vmem:[#allocation6 + $0x7a8] sm:$0xff]
    %v306 = vld [vmem:[#allocation6 + $0x7b0] sm:$0xff]
    %v307 = vld [vmem:[#allocation6 + $0x7b8] sm:$0xff]
    %v308 = vld [vmem:[#allocation6 + $0x7c0] sm:$0xff]
    %v309 = vld [vmem:[#allocation6 + $0x7c8] sm:$0xff]
    %v310 = vld [vmem:[#allocation6 + $0x7d0] sm:$0xff]
    %v311 = vld [vmem:[#allocation6 + $0x7d8] sm:$0xff]
    %v312 = vld [vmem:[#allocation6 + $0x7e0] sm:$0xff]
    %v313 = vld [vmem:[#allocation6 + $0x7e8] sm:$0xff]
    %v314 = vld [vmem:[#allocation6 + $0x7f0] sm:$0xff]
    %v315 = vld [vmem:[#allocation6 + $0x7f8] sm:$0xff]
    %v316 = vld [vmem:[#allocation6 + $0x800] sm:$0xff]
    %v317 = vld [vmem:[#allocation6 + $0x808] sm:$0xff]
    %v318 = vld [vmem:[#allocation6 + $0x810] sm:$0xff]
    %v319 = vld [vmem:[#allocation6 + $0x818] sm:$0xff]
    %v320 = vld [vmem:[#allocation6 + $0x820] sm:$0xff]
    %v321 = vld [vmem:[#allocation6 + $0x828] sm:$0xff]
    %v322 = vld [vmem:[#allocation6 + $0x830] sm:$0xff]
    %v323 = vld [vmem:[#allocation6 + $0x838] sm:$0xff]
    %v324 = vld [vmem:[#allocation6 + $0x840] sm:$0xff]
    %v325 = vld [vmem:[#allocation6 + $0x848] sm:$0xff]
    %v326 = vld [vmem:[#allocation6 + $0x850] sm:$0xff]
    %v327 = vld [vmem:[#allocation6 + $0x858] sm:$0xff]
    %v328 = vld [vmem:[#allocation6 + $0x860] sm:$0xff]
    %v329 = vld [vmem:[#allocation6 + $0x868] sm:$0xff]
    %v330 = vld [vmem:[#allocation6 + $0x870] sm:$0xff]
    %v331 = vld [vmem:[#allocation6 + $0x878] sm:$0xff]
    %v332 = vld [vmem:[#allocation6 + $0x880] sm:$0xff]
    %v333 = vld [vmem:[#allocation6 + $0x888] sm:$0xff]
    %v334 = vld [vmem:[#allocation6 + $0x890] sm:$0xff]
    %v335 = vld [vmem:[#allocation6 + $0x898] sm:$0xff]
    %v336 = vld [vmem:[#allocation6 + $0x8a0] sm:$0xff]
    %v337 = vld [vmem:[#allocation6 + $0x8a8] sm:$0xff]
    %v338 = vld [vmem:[#allocation6 + $0x8b0] sm:$0xff]
    %v339 = vld [vmem:[#allocation6 + $0x8b8] sm:$0xff]
    %v340 = vld [vmem:[#allocation6 + $0x8c0] sm:$0xff]
    %v341 = vld [vmem:[#allocation6 + $0x8c8] sm:$0xff]
    %v342 = vld [vmem:[#allocation6 + $0x8d0] sm:$0xff]
    %v343 = vld [vmem:[#allocation6 + $0x8d8] sm:$0xff]
    %v344 = vld [vmem:[#allocation6 + $0x8e0] sm:$0xff]
    %v345 = vld [vmem:[#allocation6 + $0x8e8] sm:$0xff]
    %v346 = vld [vmem:[#allocation6 + $0x8f0] sm:$0xff]
    %v347 = vld [vmem:[#allocation6 + $0x8f8] sm:$0xff]
    %v348 = vld [vmem:[#allocation6 + $0x900] sm:$0xff]
    %v349 = vld [vmem:[#allocation6 + $0x908] sm:$0xff]
    %v350 = vld [vmem:[#allocation6 + $0x910] sm:$0xff]
    %v351 = vld [vmem:[#allocation6 + $0x918] sm:$0xff]
    %v352 = vld [vmem:[#allocation6 + $0x920] sm:$0xff]
    %v353 = vld [vmem:[#allocation6 + $0x928] sm:$0xff]
    %v354 = vld [vmem:[#allocation6 + $0x930] sm:$0xff]
    %v355 = vld [vmem:[#allocation6 + $0x938] sm:$0xff]
    %v356 = vld [vmem:[#allocation6 + $0x940] sm:$0xff]
    %v357 = vld [vmem:[#allocation6 + $0x948] sm:$0xff]
    %v358 = vld [vmem:[#allocation6 + $0x950] sm:$0xff]
    %v359 = vld [vmem:[#allocation6 + $0x958] sm:$0xff]
    %v360 = vld [vmem:[#allocation6 + $0x960] sm:$0xff]
    %v361 = vld [vmem:[#allocation6 + $0x968] sm:$0xff]
    %v362 = vld [vmem:[#allocation6 + $0x970] sm:$0xff]
    %v363 = vld [vmem:[#allocation6 + $0x978] sm:$0xff]
    %v364 = vld [vmem:[#allocation6 + $0x980] sm:$0xff]
    %v365 = vld [vmem:[#allocation6 + $0x988] sm:$0xff]
    %v366 = vld [vmem:[#allocation6 + $0x990] sm:$0xff]
    %v367 = vld [vmem:[#allocation6 + $0x998] sm:$0xff]
    %v368 = vld [vmem:[#allocation6 + $0x9a0] sm:$0xff]
    %v369 = vld [vmem:[#allocation6 + $0x9a8] sm:$0xff]
    %v370 = vld [vmem:[#allocation6 + $0x9b0] sm:$0xff]
    %v371 = vld [vmem:[#allocation6 + $0x9b8] sm:$0xff]
    %v372 = vld [vmem:[#allocation6 + $0x9c0] sm:$0xff]
    %v373 = vld [vmem:[#allocation6 + $0x9c8] sm:$0xff]
    %v374 = vld [vmem:[#allocation6 + $0x9d0] sm:$0xff]
    %v375 = vld [vmem:[#allocation6 + $0x9d8] sm:$0xff]
    %v376 = vld [vmem:[#allocation6 + $0x9e0] sm:$0xff]
    %v377 = vld [vmem:[#allocation6 + $0x9e8] sm:$0xff]
    %v378 = vld [vmem:[#allocation6 + $0x9f0] sm:$0xff]
    %v379 = vld [vmem:[#allocation6 + $0x9f8] sm:$0xff]
    %v380 = vld [vmem:[#allocation6 + $0xa00] sm:$0xff]
    %v381 = vld [vmem:[#allocation6 + $0xa08] sm:$0xff]
    %v382 = vld [vmem:[#allocation6 + $0xa10] sm:$0xff]
    %v383 = vld [vmem:[#allocation6 + $0xa18] sm:$0xff]
    %v384 = vld [vmem:[#allocation6 + $0xa20] sm:$0xff]
    %v385 = vld [vmem:[#allocation6 + $0xa28] sm:$0xff]
    %v386 = vld [vmem:[#allocation6 + $0xa30] sm:$0xff]
    %v387 = vld [vmem:[#allocation6 + $0xa38] sm:$0xff]
    %v388 = vld [vmem:[#allocation6 + $0xa40] sm:$0xff]
    %v389 = vld [vmem:[#allocation6 + $0xa48] sm:$0xff]
    %v390 = vld [vmem:[#allocation6 + $0xa50] sm:$0xff]
    %v391 = vld [vmem:[#allocation6 + $0xa58] sm:$0xff]
    %v392 = vld [vmem:[#allocation6 + $0xa60] sm:$0xff]
    %v393 = vld [vmem:[#allocation6 + $0xa68] sm:$0xff]
    %v394 = vld [vmem:[#allocation6 + $0xa70] sm:$0xff]
    %v395 = vld [vmem:[#allocation6 + $0xa78] sm:$0xff]
    %v396 = vld [vmem:[#allocation6 + $0xa80] sm:$0xff]
    %v397 = vld [vmem:[#allocation6 + $0xa88] sm:$0xff]
    %v398 = vld [vmem:[#allocation6 + $0xa90] sm:$0xff]
    %v399 = vld [vmem:[#allocation6 + $0xa98] sm:$0xff]
    %v400 = vld [vmem:[#allocation6 + $0xaa0] sm:$0xff]
    %v401 = vld [vmem:[#allocation6 + $0xaa8] sm:$0xff]
    %v402 = vld [vmem:[#allocation6 + $0xab0] sm:$0xff]
    %v403 = vld [vmem:[#allocation6 + $0xab8] sm:$0xff]
    %v404 = vld [vmem:[#allocation6 + $0xac0] sm:$0xff]
    %v405 = vld [vmem:[#allocation6 + $0xac8] sm:$0xff]
    %v406 = vld [vmem:[#allocation6 + $0xad0] sm:$0xff]
    %v407 = vld [vmem:[#allocation6 + $0xad8] sm:$0xff]
    %v408 = vld [vmem:[#allocation6 + $0xae0] sm:$0xff]
    %v409 = vld [vmem:[#allocation6 + $0xae8] sm:$0xff]
    %v410 = vld [vmem:[#allocation6 + $0xaf0] sm:$0xff]
    %v411 = vld [vmem:[#allocation6 + $0xaf8] sm:$0xff]
    %v412 = vld [vmem:[#allocation6 + $0xb00] sm:$0xff]
    %v413 = vld [vmem:[#allocation6 + $0xb08] sm:$0xff]
    %v414 = vld [vmem:[#allocation6 + $0xb10] sm:$0xff]
    %v415 = vld [vmem:[#allocation6 + $0xb18] sm:$0xff]
    %v416 = vld [vmem:[#allocation6 + $0xb20] sm:$0xff]
    %v417 = vld [vmem:[#allocation6 + $0xb28] sm:$0xff]
    %v418 = vld [vmem:[#allocation6 + $0xb30] sm:$0xff]
    %v419 = vld [vmem:[#allocation6 + $0xb38] sm:$0xff]
    %v420 = vld [vmem:[#allocation6 + $0xb40] sm:$0xff]
    %v421 = vld [vmem:[#allocation6 + $0xb48] sm:$0xff]
    %v422 = vld [vmem:[#allocation6 + $0xb50] sm:$0xff]
    %v423 = vld [vmem:[#allocation6 + $0xb58] sm:$0xff]
    %v424 = vld [vmem:[#allocation6 + $0xb60] sm:$0xff]
    %v425 = vld [vmem:[#allocation6 + $0xb68] sm:$0xff]
    %v426 = vld [vmem:[#allocation6 + $0xb70] sm:$0xff]
    %v427 = vld [vmem:[#allocation6 + $0xb78] sm:$0xff]
    %v428 = vld [vmem:[#allocation6 + $0xb80] sm:$0xff]
    %v429 = vld [vmem:[#allocation6 + $0xb88] sm:$0xff]
    %v430 = vld [vmem:[#allocation6 + $0xb90] sm:$0xff]
    %v431 = vld [vmem:[#allocation6 + $0xb98] sm:$0xff]
    %v432 = vld [vmem:[#allocation6 + $0xba0] sm:$0xff]
    %v433 = vld [vmem:[#allocation6 + $0xba8] sm:$0xff]
    %v434 = vld [vmem:[#allocation6 + $0xbb0] sm:$0xff]
    %v435 = vld [vmem:[#allocation6 + $0xbb8] sm:$0xff]
    %v436 = vld [vmem:[#allocation6 + $0xbc0] sm:$0xff]
    %v437 = vld [vmem:[#allocation6 + $0xbc8] sm:$0xff]
    %v438 = vld [vmem:[#allocation6 + $0xbd0] sm:$0xff]
    %v439 = vld [vmem:[#allocation6 + $0xbd8] sm:$0xff]
    %v440 = vld [vmem:[#allocation6 + $0xbe0] sm:$0xff]
    %v441 = vld [vmem:[#allocation6 + $0xbe8] sm:$0xff]
    %v442 = vld [vmem:[#allocation6 + $0xbf0] sm:$0xff]
    %v443 = vld [vmem:[#allocation6 + $0xbf8] sm:$0xff]
    %v444 = vld [vmem:[#allocation6 + $0xc00] sm:$0xff]
    %v445 = vld [vmem:[#allocation6 + $0xc08] sm:$0xff]
    %v446 = vld [vmem:[#allocation6 + $0xc10] sm:$0xff]
    %v447 = vld [vmem:[#allocation6 + $0xc18] sm:$0xff]
    %v448 = vld [vmem:[#allocation6 + $0xc20] sm:$0xff]
    %v449 = vld [vmem:[#allocation6 + $0xc28] sm:$0xff]
    %v450 = vld [vmem:[#allocation6 + $0xc30] sm:$0xff]
    %v451 = vld [vmem:[#allocation6 + $0xc38] sm:$0xff]
    %v452 = vld [vmem:[#allocation6 + $0xc40] sm:$0xff]
    %v453 = vld [vmem:[#allocation6 + $0xc48] sm:$0xff]
    %v454 = vld [vmem:[#allocation6 + $0xc50] sm:$0xff]
    %v455 = vld [vmem:[#allocation6 + $0xc58] sm:$0xff]
    %v456 = vld [vmem:[#allocation6 + $0xc60] sm:$0xff]
    %v457 = vld [vmem:[#allocation6 + $0xc68] sm:$0xff]
    %v458 = vld [vmem:[#allocation6 + $0xc70] sm:$0xff]
    %v459 = vld [vmem:[#allocation6 + $0xc78] sm:$0xff]
    %v460 = vld [vmem:[#allocation6 + $0xc80] sm:$0xff]
    %v461 = vld [vmem:[#allocation6 + $0xc88] sm:$0xff]
    %v462 = vld [vmem:[#allocation6 + $0xc90] sm:$0xff]
    %v463 = vld [vmem:[#allocation6 + $0xc98] sm:$0xff]
    %v464 = vld [vmem:[#allocation6 + $0xca0] sm:$0xff]
    %v465 = vld [vmem:[#allocation6 + $0xca8] sm:$0xff]
    %v466 = vld [vmem:[#allocation6 + $0xcb0] sm:$0xff]
    %v467 = vld [vmem:[#allocation6 + $0xcb8] sm:$0xff]
    %v468 = vld [vmem:[#allocation6 + $0xcc0] sm:$0xff]
    %v469 = vld [vmem:[#allocation6 + $0xcc8] sm:$0xff]
    %v470 = vld [vmem:[#allocation6 + $0xcd0] sm:$0xff]
    %v471 = vld [vmem:[#allocation6 + $0xcd8] sm:$0xff]
    %v472 = vld [vmem:[#allocation6 + $0xce0] sm:$0xff]
    %v473 = vld [vmem:[#allocation6 + $0xce8] sm:$0xff]
    %v474 = vld [vmem:[#allocation6 + $0xcf0] sm:$0xff]
    %v475 = vld [vmem:[#allocation6 + $0xcf8] sm:$0xff]
    %v476 = vld [vmem:[#allocation6 + $0xd00] sm:$0xff]
    %v477 = vld [vmem:[#allocation6 + $0xd08] sm:$0xff]
    %v478 = vld [vmem:[#allocation6 + $0xd10] sm:$0xff]
    %v479 = vld [vmem:[#allocation6 + $0xd18] sm:$0xff]
    %v480 = vld [vmem:[#allocation6 + $0xd20] sm:$0xff]
    %v481 = vld [vmem:[#allocation6 + $0xd28] sm:$0xff]
    %v482 = vld [vmem:[#allocation6 + $0xd30] sm:$0xff]
    %v483 = vld [vmem:[#allocation6 + $0xd38] sm:$0xff]
    %v484 = vld [vmem:[#allocation6 + $0xd40] sm:$0xff]
    %v485 = vld [vmem:[#allocation6 + $0xd48] sm:$0xff]
    %v486 = vld [vmem:[#allocation6 + $0xd50] sm:$0xff]
    %v487 = vld [vmem:[#allocation6 + $0xd58] sm:$0xff]
    %v488 = vld [vmem:[#allocation6 + $0xd60] sm:$0xff]
    %v489 = vld [vmem:[#allocation6 + $0xd68] sm:$0xff]
    %v490 = vld [vmem:[#allocation6 + $0xd70] sm:$0xff]
    %v491 = vld [vmem:[#allocation6 + $0xd78] sm:$0xff]
    %v492 = vld [vmem:[#allocation6 + $0xd80] sm:$0xff]
    %v493 = vld [vmem:[#allocation6 + $0xd88] sm:$0xff]
    %v494 = vld [vmem:[#allocation6 + $0xd90] sm:$0xff]
    %v495 = vld [vmem:[#allocation6 + $0xd98] sm:$0xff]
    %v496 = vld [vmem:[#allocation6 + $0xda0] sm:$0xff]
    %v497 = vld [vmem:[#allocation6 + $0xda8] sm:$0xff]
    %v498 = vld [vmem:[#allocation6 + $0xdb0] sm:$0xff]
    %v499 = vld [vmem:[#allocation6 + $0xdb8] sm:$0xff]
    %v500 = vld [vmem:[#allocation6 + $0xdc0] sm:$0xff]
    %v501 = vld [vmem:[#allocation6 + $0xdc8] sm:$0xff]
    %v502 = vld [vmem:[#allocation6 + $0xdd0] sm:$0xff]
    %v503 = vld [vmem:[#allocation6 + $0xdd8] sm:$0xff]
    %v504 = vld [vmem:[#allocation6 + $0xde0] sm:$0xff]
    %v505 = vld [vmem:[#allocation6 + $0xde8] sm:$0xff]
    %v506 = vld [vmem:[#allocation6 + $0xdf0] sm:$0xff]
    %v507 = vld [vmem:[#allocation6 + $0xdf8] sm:$0xff]
    %v508 = vld [vmem:[#allocation6 + $0xe00] sm:$0xff]
    %v509 = vld [vmem:[#allocation6 + $0xe08] sm:$0xff]
    %v510 = vld [vmem:[#allocation6 + $0xe10] sm:$0xff]
    %v511 = vld [vmem:[#allocation6 + $0xe18] sm:$0xff]
    %v512 = vld [vmem:[#allocation6 + $0xe20] sm:$0xff]
    %v513 = vld [vmem:[#allocation6 + $0xe28] sm:$0xff]
    %v514 = vld [vmem:[#allocation6 + $0xe30] sm:$0xff]
    %v515 = vld [vmem:[#allocation6 + $0xe38] sm:$0xff]
    %v516 = vld [vmem:[#allocation6 + $0xe40] sm:$0xff]
    %v517 = vld [vmem:[#allocation6 + $0xe48] sm:$0xff]
    %v518 = vld [vmem:[#allocation6 + $0xe50] sm:$0xff]
    %v519 = vld [vmem:[#allocation6 + $0xe58] sm:$0xff]
    %v520 = vld [vmem:[#allocation6 + $0xe60] sm:$0xff]
    %v521 = vld [vmem:[#allocation6 + $0xe68] sm:$0xff]
    %v522 = vld [vmem:[#allocation6 + $0xe70] sm:$0xff]
    %v523 = vld [vmem:[#allocation6 + $0xe78] sm:$0xff]
    %v524 = vld [vmem:[#allocation6 + $0xe80] sm:$0xff]
    %v525 = vld [vmem:[#allocation6 + $0xe88] sm:$0xff]
    %v526 = vld [vmem:[#allocation6 + $0xe90] sm:$0xff]
    %v527 = vld [vmem:[#allocation6 + $0xe98] sm:$0xff]
    %v528 = vld [vmem:[#allocation6 + $0xea0] sm:$0xff]
    %v529 = vld [vmem:[#allocation6 + $0xea8] sm:$0xff]
    %v530 = vld [vmem:[#allocation6 + $0xeb0] sm:$0xff]
    %v531 = vld [vmem:[#allocation6 + $0xeb8] sm:$0xff]
    %v532 = vld [vmem:[#allocation6 + $0xec0] sm:$0xff]
    %v533 = vld [vmem:[#allocation6 + $0xec8] sm:$0xff]
    %v534 = vld [vmem:[#allocation6 + $0xed0] sm:$0xff]
    %v535 = vld [vmem:[#allocation6 + $0xed8] sm:$0xff]
    %v536 = vld [vmem:[#allocation6 + $0xee0] sm:$0xff]
    %v537 = vld [vmem:[#allocation6 + $0xee8] sm:$0xff]
    %v538 = vld [vmem:[#allocation6 + $0xef0] sm:$0xff]
    %v539 = vld [vmem:[#allocation6 + $0xef8] sm:$0xff]
    %v540 = vld [vmem:[#allocation6 + $0xf00] sm:$0xff]
    %v541 = vld [vmem:[#allocation6 + $0xf08] sm:$0xff]
    %v542 = vld [vmem:[#allocation6 + $0xf10] sm:$0xff]
    %v543 = vld [vmem:[#allocation6 + $0xf18] sm:$0xff]
    %v544 = vld [vmem:[#allocation6 + $0xf20] sm:$0xff]
    %v545 = vld [vmem:[#allocation6 + $0xf28] sm:$0xff]
    %v546 = vld [vmem:[#allocation6 + $0xf30] sm:$0xff]
    %v547 = vld [vmem:[#allocation6 + $0xf38] sm:$0xff]
    %v548 = vld [vmem:[#allocation6 + $0xf40] sm:$0xff]
    %v549 = vld [vmem:[#allocation6 + $0xf48] sm:$0xff]
    %v550 = vld [vmem:[#allocation6 + $0xf50] sm:$0xff]
    %v551 = vld [vmem:[#allocation6 + $0xf58] sm:$0xff]
    %v552 = vld [vmem:[#allocation6 + $0xf60] sm:$0xff]
    %v553 = vld [vmem:[#allocation6 + $0xf68] sm:$0xff]
    %v554 = vld [vmem:[#allocation6 + $0xf70] sm:$0xff]
    %v555 = vld [vmem:[#allocation6 + $0xf78] sm:$0xff]
    %v556 = vld [vmem:[#allocation6 + $0xf80] sm:$0xff]
    %v557 = vld [vmem:[#allocation6 + $0xf88] sm:$0xff]
    %v558 = vld [vmem:[#allocation6 + $0xf90] sm:$0xff]
    %v559 = vld [vmem:[#allocation6 + $0xf98] sm:$0xff]
    %v560 = vld [vmem:[#allocation6 + $0xfa0] sm:$0xff]
    %v561 = vld [vmem:[#allocation6 + $0xfa8] sm:$0xff]
    %v562 = vld [vmem:[#allocation6 + $0xfb0] sm:$0xff]
    %v563 = vld [vmem:[#allocation6 + $0xfb8] sm:$0xff]
    %v564 = vld [vmem:[#allocation6 + $0xfc0] sm:$0xff]
    %v565 = vld [vmem:[#allocation6 + $0xfc8] sm:$0xff]
    %v566 = vld [vmem:[#allocation6 + $0xfd0] sm:$0xff]
    %v567 = vld [vmem:[#allocation6 + $0xfd8] sm:$0xff]
    %v568 = vld [vmem:[#allocation6 + $0xfe0] sm:$0xff]
    %v569 = vld [vmem:[#allocation6 + $0xfe8] sm:$0xff]
    %v570 = vld [vmem:[#allocation6 + $0xff0] sm:$0xff]
    %v571 = vld [vmem:[#allocation6 + $0xff8] sm:$0xff]
    %v572 = vld [vmem:[#allocation8] sm:$0xff]
    %v574 = vlaneseq
    %v575 = vshrl.u32 %v574, 7
    %v576 = vsub.s32 0, %v575
    %v577 = vrot.slane %v59, %v576
    %v578 = vlaneseq
    %v579 = vshrl.u32 %v578, 7
    %v580 = vsub.s32 1, %v579
    %v581 = vrot.slane %v59, %v580
    %v582 = vlaneseq
    %v583 = vshrl.u32 %v582, 7
    %v584 = vsub.s32 2, %v583
    %v585 = vrot.slane %v59, %v584
    %v586 = vlaneseq
    %v587 = vshrl.u32 %v586, 7
    %v588 = vsub.s32 3, %v587
    %v589 = vrot.slane %v59, %v588
    %v595 = vlaneseq
    %v596 = vshrl.u32 %v595, 7
    %v597 = vsub.s32 0, %v596
    %v598 = vrot.slane %v572, %v597
    %v599 = vlaneseq
    %v600 = vshrl.u32 %v599, 7
    %v601 = vsub.s32 1, %v600
    %v602 = vrot.slane %v572, %v601
    %v603 = vlaneseq
    %v604 = vshrl.u32 %v603, 7
    %v605 = vsub.s32 2, %v604
    %v606 = vrot.slane %v572, %v605
    %v607 = vlaneseq
    %v608 = vshrl.u32 %v607, 7
    %v609 = vsub.s32 3, %v608
    %v610 = vrot.slane %v572, %v609
    %v611 = vlaneseq
    %v612 = vshrl.u32 %v611, 7
    %v613 = vsub.s32 4, %v612
    %v614 = vrot.slane %v572, %v613
    %v615 = vlaneseq
    %v616 = vshrl.u32 %v615, 7
    %v617 = vsub.s32 5, %v616
    %v618 = vrot.slane %v572, %v617
    %v619 = vlaneseq
    %v620 = vshrl.u32 %v619, 7
    %v621 = vsub.s32 6, %v620
    %v622 = vrot.slane %v572, %v621
    %v623 = vlaneseq
    %v624 = vshrl.u32 %v623, 7
    %v625 = vsub.s32 7, %v624
    %v626 = vrot.slane %v572, %v625
    %635 = vmatprep.subr.mxu0 %v61
    %636 = vmatpush1.msra.mxu0 %v60
    %637 = vmatprep.subr.mxu0 %v69
    %638 = vmatpush1.msra.mxu0 %v68
    %639 = vmatprep.subr.mxu0 %v77
    %640 = vmatpush1.msra.mxu0 %v76
    %641 = vmatprep.subr.mxu0 %v85
    %642 = vmatpush1.msra.mxu0 %v84
    %643 = vmatprep.subr.mxu0 %v93
    %644 = vmatpush1.msra.mxu0 %v92
    %645 = vmatprep.subr.mxu0 %v101
    %646 = vmatpush1.msra.mxu0 %v100
    %647 = vmatprep.subr.mxu0 %v109
    %648 = vmatpush1.msra.mxu0 %v108
    %649 = vmatprep.subr.mxu0 %v117
    %650 = vmatpush1.msra.mxu0 %v116
    %651 = vmatprep.subr.mxu0 %v125
    %652 = vmatpush1.msra.mxu0 %v124
    %653 = vmatprep.subr.mxu0 %v133
    %654 = vmatpush1.msra.mxu0 %v132
    %655 = vmatprep.subr.mxu0 %v141
    %656 = vmatpush1.msra.mxu0 %v140
    %657 = vmatprep.subr.mxu0 %v149
    %658 = vmatpush1.msra.mxu0 %v148
    %659 = vmatprep.subr.mxu0 %v157
    %660 = vmatpush1.msra.mxu0 %v156
    %661 = vmatprep.subr.mxu0 %v165
    %662 = vmatpush1.msra.mxu0 %v164
    %663 = vmatprep.subr.mxu0 %v173
    %664 = vmatpush1.msra.mxu0 %v172
    %665 = vmatprep.subr.mxu0 %v181
    %666 = vmatpush1.msra.mxu0 %v180
    %667 = vmatprep.subr.mxu0 %v189
    %668 = vmatpush1.msra.mxu0 %v188
    %669 = vmatprep.subr.mxu0 %v197
    %670 = vmatpush1.msra.mxu0 %v196
    %671 = vmatprep.subr.mxu0 %v205
    %672 = vmatpush1.msra.mxu0 %v204
    %673 = vmatprep.subr.mxu0 %v213
    %674 = vmatpush1.msra.mxu0 %v212
    %675 = vmatprep.subr.mxu0 %v221
    %676 = vmatpush1.msra.mxu0 %v220
    %677 = vmatprep.subr.mxu0 %v229
    %678 = vmatpush1.msra.mxu0 %v228
    %679 = vmatprep.subr.mxu0 %v237
    %680 = vmatpush1.msra.mxu0 %v236
    %681 = vmatprep.subr.mxu0 %v245
    %682 = vmatpush1.msra.mxu0 %v244
    %683 = vmatprep.subr.mxu0 %v253
    %684 = vmatpush1.msra.mxu0 %v252
    %685 = vmatprep.subr.mxu0 %v261
    %686 = vmatpush1.msra.mxu0 %v260
    %687 = vmatprep.subr.mxu0 %v269
    %688 = vmatpush1.msra.mxu0 %v268
    %689 = vmatprep.subr.mxu0 %v277
    %690 = vmatpush1.msra.mxu0 %v276
    %691 = vmatprep.subr.mxu0 %v285
    %692 = vmatpush1.msra.mxu0 %v284
    %693 = vmatprep.subr.mxu0 %v293
    %694 = vmatpush1.msra.mxu0 %v292
    %695 = vmatprep.subr.mxu0 %v301
    %696 = vmatpush1.msra.mxu0 %v300
    %697 = vmatprep.subr.mxu0 %v309
    %698 = vmatpush1.msra.mxu0 %v308
    %699 = vmatprep.mubr.f32.mxu0 %v581
    %700 = vmatmul.mubr.f32.gmra.mrb[0].mxu0 %v577
    %v701 = vpop.f32.mrb[0].mxu0
    %v702 = vadd.f32 %v598, %v701
    %v703 = vpop.f32.mrb[0].mxu0
    %v704 = vadd.f32 %v602, %v703
    %705 = vdwg.mxu0
    %706 = vmatprep.subr.mxu0 %v317
    %707 = vmatpush1.msra.mxu0 %v316
    %708 = vmatprep.subr.mxu0 %v325
    %709 = vmatpush1.msra.mxu0 %v324
    %710 = vmatprep.subr.mxu0 %v333
    %711 = vmatpush1.msra.mxu0 %v332
    %712 = vmatprep.subr.mxu0 %v341
    %713 = vmatpush1.msra.mxu0 %v340
    %714 = vmatprep.subr.mxu0 %v349
    %715 = vmatpush1.msra.mxu0 %v348
    %716 = vmatprep.subr.mxu0 %v357
    %717 = vmatpush1.msra.mxu0 %v356
    %718 = vmatprep.subr.mxu0 %v365
    %719 = vmatpush1.msra.mxu0 %v364
    %720 = vmatprep.subr.mxu0 %v373
    %721 = vmatpush1.msra.mxu0 %v372
    %722 = vmatprep.subr.mxu0 %v381
    %723 = vmatpush1.msra.mxu0 %v380
    %724 = vmatprep.subr.mxu0 %v389
    %725 = vmatpush1.msra.mxu0 %v388
    %726 = vmatprep.subr.mxu0 %v397
    %727 = vmatpush1.msra.mxu0 %v396
    %728 = vmatprep.subr.mxu0 %v405
    %729 = vmatpush1.msra.mxu0 %v404
    %730 = vmatprep.subr.mxu0 %v413
    %731 = vmatpush1.msra.mxu0 %v412
    %732 = vmatprep.subr.mxu0 %v421
    %733 = vmatpush1.msra.mxu0 %v420
    %734 = vmatprep.subr.mxu0 %v429
    %735 = vmatpush1.msra.mxu0 %v428
    %736 = vmatprep.subr.mxu0 %v437
    %737 = vmatpush1.msra.mxu0 %v436
    %738 = vmatprep.subr.mxu0 %v445
    %739 = vmatpush1.msra.mxu0 %v444
    %740 = vmatprep.subr.mxu0 %v453
    %741 = vmatpush1.msra.mxu0 %v452
    %742 = vmatprep.subr.mxu0 %v461
    %743 = vmatpush1.msra.mxu0 %v460
    %744 = vmatprep.subr.mxu0 %v469
    %745 = vmatpush1.msra.mxu0 %v468
    %746 = vmatprep.subr.mxu0 %v477
    %747 = vmatpush1.msra.mxu0 %v476
    %748 = vmatprep.subr.mxu0 %v485
    %749 = vmatpush1.msra.mxu0 %v484
    %750 = vmatprep.subr.mxu0 %v493
    %751 = vmatpush1.msra.mxu0 %v492
    %752 = vmatprep.subr.mxu0 %v501
    %753 = vmatpush1.msra.mxu0 %v500
    %754 = vmatprep.subr.mxu0 %v509
    %755 = vmatpush1.msra.mxu0 %v508
    %756 = vmatprep.subr.mxu0 %v517
    %757 = vmatpush1.msra.mxu0 %v516
    %758 = vmatprep.subr.mxu0 %v525
    %759 = vmatpush1.msra.mxu0 %v524
    %760 = vmatprep.subr.mxu0 %v533
    %761 = vmatpush1.msra.mxu0 %v532
    %762 = vmatprep.subr.mxu0 %v541
    %763 = vmatpush1.msra.mxu0 %v540
    %764 = vmatprep.subr.mxu0 %v549
    %765 = vmatpush1.msra.mxu0 %v548
    %766 = vmatprep.subr.mxu0 %v557
    %767 = vmatpush1.msra.mxu0 %v556
    %768 = vmatprep.subr.mxu0 %v565
    %769 = vmatpush1.msra.mxu0 %v564
    %770 = vmatprep.mubr.f32.mxu0 %v589
    %771 = vmatmul.mubr.f32.gmra.mrb[0].mxu0 %v585
    %v772 = vpop.f32.mrb[0].mxu0
    %v773 = vadd.f32 %v702, %v772
    %v774 = vpop.f32.mrb[0].mxu0
    %v775 = vadd.f32 %v704, %v774
    %776 = vdwg.mxu0
    %777 = vmatprep.subr.mxu0 %v63
    %778 = vmatpush1.msra.mxu0 %v62
    %779 = vmatprep.subr.mxu0 %v71
    %780 = vmatpush1.msra.mxu0 %v70
    %781 = vmatprep.subr.mxu0 %v79
    %782 = vmatpush1.msra.mxu0 %v78
    %783 = vmatprep.subr.mxu0 %v87
    %784 = vmatpush1.msra.mxu0 %v86
    %785 = vmatprep.subr.mxu0 %v95
    %786 = vmatpush1.msra.mxu0 %v94
    %787 = vmatprep.subr.mxu0 %v103
    %788 = vmatpush1.msra.mxu0 %v102
    %789 = vmatprep.subr.mxu0 %v111
    %790 = vmatpush1.msra.mxu0 %v110
    %791 = vmatprep.subr.mxu0 %v119
    %792 = vmatpush1.msra.mxu0 %v118
    %793 = vmatprep.subr.mxu0 %v127
    %794 = vmatpush1.msra.mxu0 %v126
    %795 = vmatprep.subr.mxu0 %v135
    %796 = vmatpush1.msra.mxu0 %v134
    %797 = vmatprep.subr.mxu0 %v143
    %798 = vmatpush1.msra.mxu0 %v142
    %799 = vmatprep.subr.mxu0 %v151
    %800 = vmatpush1.msra.mxu0 %v150
    %801 = vmatprep.subr.mxu0 %v159
    %802 = vmatpush1.msra.mxu0 %v158
    %803 = vmatprep.subr.mxu0 %v167
    %804 = vmatpush1.msra.mxu0 %v166
    %805 = vmatprep.subr.mxu0 %v175
    %806 = vmatpush1.msra.mxu0 %v174
    %807 = vmatprep.subr.mxu0 %v183
    %808 = vmatpush1.msra.mxu0 %v182
    %809 = vmatprep.subr.mxu0 %v191
    %810 = vmatpush1.msra.mxu0 %v190
    %811 = vmatprep.subr.mxu0 %v199
    %812 = vmatpush1.msra.mxu0 %v198
    %813 = vmatprep.subr.mxu0 %v207
    %814 = vmatpush1.msra.mxu0 %v206
    %815 = vmatprep.subr.mxu0 %v215
    %816 = vmatpush1.msra.mxu0 %v214
    %817 = vmatprep.subr.mxu0 %v223
    %818 = vmatpush1.msra.mxu0 %v222
    %819 = vmatprep.subr.mxu0 %v231
    %820 = vmatpush1.msra.mxu0 %v230
    %821 = vmatprep.subr.mxu0 %v239
    %822 = vmatpush1.msra.mxu0 %v238
    %823 = vmatprep.subr.mxu0 %v247
    %824 = vmatpush1.msra.mxu0 %v246
    %825 = vmatprep.subr.mxu0 %v255
    %826 = vmatpush1.msra.mxu0 %v254
    %827 = vmatprep.subr.mxu0 %v263
    %828 = vmatpush1.msra.mxu0 %v262
    %829 = vmatprep.subr.mxu0 %v271
    %830 = vmatpush1.msra.mxu0 %v270
    %831 = vmatprep.subr.mxu0 %v279
    %832 = vmatpush1.msra.mxu0 %v278
    %833 = vmatprep.subr.mxu0 %v287
    %834 = vmatpush1.msra.mxu0 %v286
    %835 = vmatprep.subr.mxu0 %v295
    %836 = vmatpush1.msra.mxu0 %v294
    %837 = vmatprep.subr.mxu0 %v303
    %838 = vmatpush1.msra.mxu0 %v302
    %839 = vmatprep.subr.mxu0 %v311
    %840 = vmatpush1.msra.mxu0 %v310
    %841 = vmatprep.mubr.f32.mxu0 %v581
    %842 = vmatmul.mubr.f32.gmra.mrb[0].mxu0 %v577
    %v843 = vpop.f32.mrb[0].mxu0
    %v844 = vadd.f32 %v606, %v843
    %v845 = vpop.f32.mrb[0].mxu0
    %v846 = vadd.f32 %v610, %v845
    %847 = vdwg.mxu0
    %848 = vmatprep.subr.mxu0 %v319
    %849 = vmatpush1.msra.mxu0 %v318
    %850 = vmatprep.subr.mxu0 %v327
    %851 = vmatpush1.msra.mxu0 %v326
    %852 = vmatprep.subr.mxu0 %v335
    %853 = vmatpush1.msra.mxu0 %v334
    %854 = vmatprep.subr.mxu0 %v343
    %855 = vmatpush1.msra.mxu0 %v342
    %856 = vmatprep.subr.mxu0 %v351
    %857 = vmatpush1.msra.mxu0 %v350
    %858 = vmatprep.subr.mxu0 %v359
    %859 = vmatpush1.msra.mxu0 %v358
    %860 = vmatprep.subr.mxu0 %v367
    %861 = vmatpush1.msra.mxu0 %v366
    %862 = vmatprep.subr.mxu0 %v375
    %863 = vmatpush1.msra.mxu0 %v374
    %864 = vmatprep.subr.mxu0 %v383
    %865 = vmatpush1.msra.mxu0 %v382
    %866 = vmatprep.subr.mxu0 %v391
    %867 = vmatpush1.msra.mxu0 %v390
    %868 = vmatprep.subr.mxu0 %v399
    %869 = vmatpush1.msra.mxu0 %v398
    %870 = vmatprep.subr.mxu0 %v407
    %871 = vmatpush1.msra.mxu0 %v406
    %872 = vmatprep.subr.mxu0 %v415
    %873 = vmatpush1.msra.mxu0 %v414
    %874 = vmatprep.subr.mxu0 %v423
    %875 = vmatpush1.msra.mxu0 %v422
    %876 = vmatprep.subr.mxu0 %v431
    %877 = vmatpush1.msra.mxu0 %v430
    %878 = vmatprep.subr.mxu0 %v439
    %879 = vmatpush1.msra.mxu0 %v438
    %880 = vmatprep.subr.mxu0 %v447
    %881 = vmatpush1.msra.mxu0 %v446
    %882 = vmatprep.subr.mxu0 %v455
    %883 = vmatpush1.msra.mxu0 %v454
    %884 = vmatprep.subr.mxu0 %v463
    %885 = vmatpush1.msra.mxu0 %v462
    %886 = vmatprep.subr.mxu0 %v471
    %887 = vmatpush1.msra.mxu0 %v470
    %888 = vmatprep.subr.mxu0 %v479
    %889 = vmatpush1.msra.mxu0 %v478
    %890 = vmatprep.subr.mxu0 %v487
    %891 = vmatpush1.msra.mxu0 %v486
    %892 = vmatprep.subr.mxu0 %v495
    %893 = vmatpush1.msra.mxu0 %v494
    %894 = vmatprep.subr.mxu0 %v503
    %895 = vmatpush1.msra.mxu0 %v502
    %896 = vmatprep.subr.mxu0 %v511
    %897 = vmatpush1.msra.mxu0 %v510
    %898 = vmatprep.subr.mxu0 %v519
    %899 = vmatpush1.msra.mxu0 %v518
    %900 = vmatprep.subr.mxu0 %v527
    %901 = vmatpush1.msra.mxu0 %v526
    %902 = vmatprep.subr.mxu0 %v535
    %903 = vmatpush1.msra.mxu0 %v534
    %904 = vmatprep.subr.mxu0 %v543
    %905 = vmatpush1.msra.mxu0 %v542
    %906 = vmatprep.subr.mxu0 %v551
    %907 = vmatpush1.msra.mxu0 %v550
    %908 = vmatprep.subr.mxu0 %v559
    %909 = vmatpush1.msra.mxu0 %v558
    %910 = vmatprep.subr.mxu0 %v567
    %911 = vmatpush1.msra.mxu0 %v566
    %912 = vmatprep.mubr.f32.mxu0 %v589
    %913 = vmatmul.mubr.f32.gmra.mrb[0].mxu0 %v585
    %v914 = vpop.f32.mrb[0].mxu0
    %v915 = vadd.f32 %v844, %v914
    %v916 = vpop.f32.mrb[0].mxu0
    %v917 = vadd.f32 %v846, %v916
    %918 = vdwg.mxu0
    %919 = vmatprep.subr.mxu0 %v65
    %920 = vmatpush1.msra.mxu0 %v64
    %921 = vmatprep.subr.mxu0 %v73
    %922 = vmatpush1.msra.mxu0 %v72
    %923 = vmatprep.subr.mxu0 %v81
    %924 = vmatpush1.msra.mxu0 %v80
    %925 = vmatprep.subr.mxu0 %v89
    %926 = vmatpush1.msra.mxu0 %v88
    %927 = vmatprep.subr.mxu0 %v97
    %928 = vmatpush1.msra.mxu0 %v96
    %929 = vmatprep.subr.mxu0 %v105
    %930 = vmatpush1.msra.mxu0 %v104
    %931 = vmatprep.subr.mxu0 %v113
    %932 = vmatpush1.msra.mxu0 %v112
    %933 = vmatprep.subr.mxu0 %v121
    %934 = vmatpush1.msra.mxu0 %v120
    %935 = vmatprep.subr.mxu0 %v129
    %936 = vmatpush1.msra.mxu0 %v128
    %937 = vmatprep.subr.mxu0 %v137
    %938 = vmatpush1.msra.mxu0 %v136
    %939 = vmatprep.subr.mxu0 %v145
    %940 = vmatpush1.msra.mxu0 %v144
    %941 = vmatprep.subr.mxu0 %v153
    %942 = vmatpush1.msra.mxu0 %v152
    %943 = vmatprep.subr.mxu0 %v161
    %944 = vmatpush1.msra.mxu0 %v160
    %945 = vmatprep.subr.mxu0 %v169
    %946 = vmatpush1.msra.mxu0 %v168
    %947 = vmatprep.subr.mxu0 %v177
    %948 = vmatpush1.msra.mxu0 %v176
    %949 = vmatprep.subr.mxu0 %v185
    %950 = vmatpush1.msra.mxu0 %v184
    %951 = vmatprep.subr.mxu0 %v193
    %952 = vmatpush1.msra.mxu0 %v192
    %953 = vmatprep.subr.mxu0 %v201
    %954 = vmatpush1.msra.mxu0 %v200
    %955 = vmatprep.subr.mxu0 %v209
    %956 = vmatpush1.msra.mxu0 %v208
    %957 = vmatprep.subr.mxu0 %v217
    %958 = vmatpush1.msra.mxu0 %v216
    %959 = vmatprep.subr.mxu0 %v225
    %960 = vmatpush1.msra.mxu0 %v224
    %961 = vmatprep.subr.mxu0 %v233
    %962 = vmatpush1.msra.mxu0 %v232
    %963 = vmatprep.subr.mxu0 %v241
    %964 = vmatpush1.msra.mxu0 %v240
    %965 = vmatprep.subr.mxu0 %v249
    %966 = vmatpush1.msra.mxu0 %v248
    %967 = vmatprep.subr.mxu0 %v257
    %968 = vmatpush1.msra.mxu0 %v256
    %969 = vmatprep.subr.mxu0 %v265
    %970 = vmatpush1.msra.mxu0 %v264
    %971 = vmatprep.subr.mxu0 %v273
    %972 = vmatpush1.msra.mxu0 %v272
    %973 = vmatprep.subr.mxu0 %v281
    %974 = vmatpush1.msra.mxu0 %v280
    %975 = vmatprep.subr.mxu0 %v289
    %976 = vmatpush1.msra.mxu0 %v288
    %977 = vmatprep.subr.mxu0 %v297
    %978 = vmatpush1.msra.mxu0 %v296
    %979 = vmatprep.subr.mxu0 %v305
    %980 = vmatpush1.msra.mxu0 %v304
    %981 = vmatprep.subr.mxu0 %v313
    %982 = vmatpush1.msra.mxu0 %v312
    %983 = vmatprep.mubr.f32.mxu0 %v581
    %984 = vmatmul.mubr.f32.gmra.mrb[0].mxu0 %v577
    %v985 = vpop.f32.mrb[0].mxu0
    %v986 = vadd.f32 %v614, %v985
    %v987 = vpop.f32.mrb[0].mxu0
    %v988 = vadd.f32 %v618, %v987
    %989 = vdwg.mxu0
    %990 = vmatprep.subr.mxu0 %v321
    %991 = vmatpush1.msra.mxu0 %v320
    %992 = vmatprep.subr.mxu0 %v329
    %993 = vmatpush1.msra.mxu0 %v328
    %994 = vmatprep.subr.mxu0 %v337
    %995 = vmatpush1.msra.mxu0 %v336
    %996 = vmatprep.subr.mxu0 %v345
    %997 = vmatpush1.msra.mxu0 %v344
    %998 = vmatprep.subr.mxu0 %v353
    %999 = vmatpush1.msra.mxu0 %v352
    %1000 = vmatprep.subr.mxu0 %v361
    %1001 = vmatpush1.msra.mxu0 %v360
    %1002 = vmatprep.subr.mxu0 %v369
    %1003 = vmatpush1.msra.mxu0 %v368
    %1004 = vmatprep.subr.mxu0 %v377
    %1005 = vmatpush1.msra.mxu0 %v376
    %1006 = vmatprep.subr.mxu0 %v385
    %1007 = vmatpush1.msra.mxu0 %v384
    %1008 = vmatprep.subr.mxu0 %v393
    %1009 = vmatpush1.msra.mxu0 %v392
    %1010 = vmatprep.subr.mxu0 %v401
    %1011 = vmatpush1.msra.mxu0 %v400
    %1012 = vmatprep.subr.mxu0 %v409
    %1013 = vmatpush1.msra.mxu0 %v408
    %1014 = vmatprep.subr.mxu0 %v417
    %1015 = vmatpush1.msra.mxu0 %v416
    %1016 = vmatprep.subr.mxu0 %v425
    %1017 = vmatpush1.msra.mxu0 %v424
    %1018 = vmatprep.subr.mxu0 %v433
    %1019 = vmatpush1.msra.mxu0 %v432
    %1020 = vmatprep.subr.mxu0 %v441
    %1021 = vmatpush1.msra.mxu0 %v440
    %1022 = vmatprep.subr.mxu0 %v449
    %1023 = vmatpush1.msra.mxu0 %v448
    %1024 = vmatprep.subr.mxu0 %v457
    %1025 = vmatpush1.msra.mxu0 %v456
    %1026 = vmatprep.subr.mxu0 %v465
    %1027 = vmatpush1.msra.mxu0 %v464
    %1028 = vmatprep.subr.mxu0 %v473
    %1029 = vmatpush1.msra.mxu0 %v472
    %1030 = vmatprep.subr.mxu0 %v481
    %1031 = vmatpush1.msra.mxu0 %v480
    %1032 = vmatprep.subr.mxu0 %v489
    %1033 = vmatpush1.msra.mxu0 %v488
    %1034 = vmatprep.subr.mxu0 %v497
    %1035 = vmatpush1.msra.mxu0 %v496
    %1036 = vmatprep.subr.mxu0 %v505
    %1037 = vmatpush1.msra.mxu0 %v504
    %1038 = vmatprep.subr.mxu0 %v513
    %1039 = vmatpush1.msra.mxu0 %v512
    %1040 = vmatprep.subr.mxu0 %v521
    %1041 = vmatpush1.msra.mxu0 %v520
    %1042 = vmatprep.subr.mxu0 %v529
    %1043 = vmatpush1.msra.mxu0 %v528
    %1044 = vmatprep.subr.mxu0 %v537
    %1045 = vmatpush1.msra.mxu0 %v536
    %1046 = vmatprep.subr.mxu0 %v545
    %1047 = vmatpush1.msra.mxu0 %v544
    %1048 = vmatprep.subr.mxu0 %v553
    %1049 = vmatpush1.msra.mxu0 %v552
    %1050 = vmatprep.subr.mxu0 %v561
    %1051 = vmatpush1.msra.mxu0 %v560
    %1052 = vmatprep.subr.mxu0 %v569
    %1053 = vmatpush1.msra.mxu0 %v568
    %1054 = vmatprep.mubr.f32.mxu0 %v589
    %1055 = vmatmul.mubr.f32.gmra.mrb[0].mxu0 %v585
    %v1056 = vpop.f32.mrb[0].mxu0
    %v1057 = vadd.f32 %v986, %v1056
    %v1058 = vpop.f32.mrb[0].mxu0
    %v1059 = vadd.f32 %v988, %v1058
    %1060 = vdwg.mxu0
    %1061 = vmatprep.subr.mxu0 %v67
    %1062 = vmatpush1.msra.mxu0 %v66
    %1063 = vmatprep.subr.mxu0 %v75
    %1064 = vmatpush1.msra.mxu0 %v74
    %1065 = vmatprep.subr.mxu0 %v83
    %1066 = vmatpush1.msra.mxu0 %v82
    %1067 = vmatprep.subr.mxu0 %v91
    %1068 = vmatpush1.msra.mxu0 %v90
    %1069 = vmatprep.subr.mxu0 %v99
    %1070 = vmatpush1.msra.mxu0 %v98
    %1071 = vmatprep.subr.mxu0 %v107
    %1072 = vmatpush1.msra.mxu0 %v106
    %1073 = vmatprep.subr.mxu0 %v115
    %1074 = vmatpush1.msra.mxu0 %v114
    %1075 = vmatprep.subr.mxu0 %v123
    %1076 = vmatpush1.msra.mxu0 %v122
    %1077 = vmatprep.subr.mxu0 %v131
    %1078 = vmatpush1.msra.mxu0 %v130
    %1079 = vmatprep.subr.mxu0 %v139
    %1080 = vmatpush1.msra.mxu0 %v138
    %1081 = vmatprep.subr.mxu0 %v147
    %1082 = vmatpush1.msra.mxu0 %v146
    %1083 = vmatprep.subr.mxu0 %v155
    %1084 = vmatpush1.msra.mxu0 %v154
    %1085 = vmatprep.subr.mxu0 %v163
    %1086 = vmatpush1.msra.mxu0 %v162
    %1087 = vmatprep.subr.mxu0 %v171
    %1088 = vmatpush1.msra.mxu0 %v170
    %1089 = vmatprep.subr.mxu0 %v179
    %1090 = vmatpush1.msra.mxu0 %v178
    %1091 = vmatprep.subr.mxu0 %v187
    %1092 = vmatpush1.msra.mxu0 %v186
    %1093 = vmatprep.subr.mxu0 %v195
    %1094 = vmatpush1.msra.mxu0 %v194
    %1095 = vmatprep.subr.mxu0 %v203
    %1096 = vmatpush1.msra.mxu0 %v202
    %1097 = vmatprep.subr.mxu0 %v211
    %1098 = vmatpush1.msra.mxu0 %v210
    %1099 = vmatprep.subr.mxu0 %v219
    %1100 = vmatpush1.msra.mxu0 %v218
    %1101 = vmatprep.subr.mxu0 %v227
    %1102 = vmatpush1.msra.mxu0 %v226
    %1103 = vmatprep.subr.mxu0 %v235
    %1104 = vmatpush1.msra.mxu0 %v234
    %1105 = vmatprep.subr.mxu0 %v243
    %1106 = vmatpush1.msra.mxu0 %v242
    %1107 = vmatprep.subr.mxu0 %v251
    %1108 = vmatpush1.msra.mxu0 %v250
    %1109 = vmatprep.subr.mxu0 %v259
    %1110 = vmatpush1.msra.mxu0 %v258
    %1111 = vmatprep.subr.mxu0 %v267
    %1112 = vmatpush1.msra.mxu0 %v266
    %1113 = vmatprep.subr.mxu0 %v275
    %1114 = vmatpush1.msra.mxu0 %v274
    %1115 = vmatprep.subr.mxu0 %v283
    %1116 = vmatpush1.msra.mxu0 %v282
    %1117 = vmatprep.subr.mxu0 %v291
    %1118 = vmatpush1.msra.mxu0 %v290
    %1119 = vmatprep.subr.mxu0 %v299
    %1120 = vmatpush1.msra.mxu0 %v298
    %1121 = vmatprep.subr.mxu0 %v307
    %1122 = vmatpush1.msra.mxu0 %v306
    %1123 = vmatprep.subr.mxu0 %v315
    %1124 = vmatpush1.msra.mxu0 %v314
    %1125 = vmatprep.mubr.f32.mxu0 %v581
    %1126 = vmatmul.mubr.f32.gmra.mrb[0].mxu0 %v577
    %v1127 = vpop.f32.mrb[0].mxu0
    %v1128 = vadd.f32 %v622, %v1127
    %v1129 = vpop.f32.mrb[0].mxu0
    %v1130 = vadd.f32 %v626, %v1129
    %1131 = vdwg.mxu0
    %1132 = vmatprep.subr.mxu0 %v323
    %1133 = vmatpush1.msra.mxu0 %v322
    %1134 = vmatprep.subr.mxu0 %v331
    %1135 = vmatpush1.msra.mxu0 %v330
    %1136 = vmatprep.subr.mxu0 %v339
    %1137 = vmatpush1.msra.mxu0 %v338
    %1138 = vmatprep.subr.mxu0 %v347
    %1139 = vmatpush1.msra.mxu0 %v346
    %1140 = vmatprep.subr.mxu0 %v355
    %1141 = vmatpush1.msra.mxu0 %v354
    %1142 = vmatprep.subr.mxu0 %v363
    %1143 = vmatpush1.msra.mxu0 %v362
    %1144 = vmatprep.subr.mxu0 %v371
    %1145 = vmatpush1.msra.mxu0 %v370
    %1146 = vmatprep.subr.mxu0 %v379
    %1147 = vmatpush1.msra.mxu0 %v378
    %1148 = vmatprep.subr.mxu0 %v387
    %1149 = vmatpush1.msra.mxu0 %v386
    %1150 = vmatprep.subr.mxu0 %v395
    %1151 = vmatpush1.msra.mxu0 %v394
    %1152 = vmatprep.subr.mxu0 %v403
    %1153 = vmatpush1.msra.mxu0 %v402
    %1154 = vmatprep.subr.mxu0 %v411
    %1155 = vmatpush1.msra.mxu0 %v410
    %1156 = vmatprep.subr.mxu0 %v419
    %1157 = vmatpush1.msra.mxu0 %v418
    %1158 = vmatprep.subr.mxu0 %v427
    %1159 = vmatpush1.msra.mxu0 %v426
    %1160 = vmatprep.subr.mxu0 %v435
    %1161 = vmatpush1.msra.mxu0 %v434
    %1162 = vmatprep.subr.mxu0 %v443
    %1163 = vmatpush1.msra.mxu0 %v442
    %1164 = vmatprep.subr.mxu0 %v451
    %1165 = vmatpush1.msra.mxu0 %v450
    %1166 = vmatprep.subr.mxu0 %v459
    %1167 = vmatpush1.msra.mxu0 %v458
    %1168 = vmatprep.subr.mxu0 %v467
    %1169 = vmatpush1.msra.mxu0 %v466
    %1170 = vmatprep.subr.mxu0 %v475
    %1171 = vmatpush1.msra.mxu0 %v474
    %1172 = vmatprep.subr.mxu0 %v483
    %1173 = vmatpush1.msra.mxu0 %v482
    %1174 = vmatprep.subr.mxu0 %v491
    %1175 = vmatpush1.msra.mxu0 %v490
    %1176 = vmatprep.subr.mxu0 %v499
    %1177 = vmatpush1.msra.mxu0 %v498
    %1178 = vmatprep.subr.mxu0 %v507
    %1179 = vmatpush1.msra.mxu0 %v506
    %1180 = vmatprep.subr.mxu0 %v515
    %1181 = vmatpush1.msra.mxu0 %v514
    %1182 = vmatprep.subr.mxu0 %v523
    %1183 = vmatpush1.msra.mxu0 %v522
    %1184 = vmatprep.subr.mxu0 %v531
    %1185 = vmatpush1.msra.mxu0 %v530
    %1186 = vmatprep.subr.mxu0 %v539
    %1187 = vmatpush1.msra.mxu0 %v538
    %1188 = vmatprep.subr.mxu0 %v547
    %1189 = vmatpush1.msra.mxu0 %v546
    %1190 = vmatprep.subr.mxu0 %v555
    %1191 = vmatpush1.msra.mxu0 %v554
    %1192 = vmatprep.subr.mxu0 %v563
    %1193 = vmatpush1.msra.mxu0 %v562
    %1194 = vmatprep.subr.mxu0 %v571
    %1195 = vmatpush1.msra.mxu0 %v570
    %1196 = vmatprep.mubr.f32.mxu0 %v589
    %1197 = vmatmul.mubr.f32.gmra.mrb[0].mxu0 %v585
    %v1198 = vpop.f32.mrb[0].mxu0
    %v1199 = vadd.f32 %v1128, %v1198
    %v1200 = vpop.f32.mrb[0].mxu0
    %v1201 = vadd.f32 %v1130, %v1200
    %1202 = vdwg.mxu0
    %s1203 = sld [smem:[#allocation2]]
    %v1204 = vstv %s1203
    %v1205 = vmax.f32 %v773, %v1204
    %v1206 = vmax.f32 %v775, %v1204
    %v1207 = vmax.f32 %v915, %v1204
    %v1208 = vmax.f32 %v917, %v1204
    %v1209 = vmax.f32 %v1057, %v1204
    %v1210 = vmax.f32 %v1059, %v1204
    %v1211 = vmax.f32 %v1199, %v1204
    %v1212 = vmax.f32 %v1201, %v1204
    %v1221 = vcombine.low %v1205, %v1206
    %v1222 = vcombine.low %v1207, %v1208
    %v1223 = vcombine.low %v1209, %v1210
    %v1224 = vcombine.low %v1211, %v1212
    %v1226 = vunpack.c.l.s4 1966171168
    %v1227 = vunpack.c.0.s8 %v1226
    %v1228 = vlaneseq
    %v1229 = vshrl.u32 %v1228, 7
    %v1230 = vsub.s32 %v1227, %v1229
    %v1231 = vrot.slane %v1221, %v1230
    %v1233 = vunpack.c.l.s4 1966171168
    %v1234 = vunpack.c.0.s8 %v1233
    %v1235 = vlaneseq
    %v1236 = vshrl.u32 %v1235, 7
    %v1237 = vsub.s32 %v1234, %v1236
    %v1238 = vrot.slane %v1222, %v1237
    %v1240 = vunpack.c.l.s4 1966171168
    %v1241 = vunpack.c.0.s8 %v1240
    %v1242 = vlaneseq
    %v1243 = vshrl.u32 %v1242, 7
    %v1244 = vsub.s32 %v1241, %v1243
    %v1245 = vrot.slane %v1223, %v1244
    %v1247 = vunpack.c.l.s4 1966171168
    %v1248 = vunpack.c.0.s8 %v1247
    %v1249 = vlaneseq
    %v1250 = vshrl.u32 %v1249, 7
    %v1251 = vsub.s32 %v1248, %v1250
    %v1252 = vrot.slane %v1224, %v1251
    %v1253 = vcombine.low %v1231, %v1238
    %v1254 = vcombine.low %v1245, %v1252
    %v1256 = vunpack.c.l.s4 1966171168
    %v1257 = vunpack.c.0.s8 %v1256
    %v1258 = vlaneseq
    %v1259 = vshrl.u32 %v1258, 7
    %v1260 = vsub.s32 %v1257, %v1259
    %v1261 = vrot.slane %v1253, %v1260
    %v1263 = vunpack.c.l.s4 1966171168
    %v1264 = vunpack.c.0.s8 %v1263
    %v1265 = vlaneseq
    %v1266 = vshrl.u32 %v1265, 7
    %v1267 = vsub.s32 %v1264, %v1266
    %v1268 = vrot.slane %v1254, %v1267
    %v1269 = vcombine.low %v1261, %v1268
    %1271 = vst [vmem:[#allocation9] sm:$0xff] %v1269
    %v1272 = vmin.f32 %v773, %v1204
    %v1273 = vmin.f32 %v775, %v1204
    %v1274 = vmin.f32 %v915, %v1204
    %v1275 = vmin.f32 %v917, %v1204
    %v1276 = vmin.f32 %v1057, %v1204
    %v1277 = vmin.f32 %v1059, %v1204
    %v1278 = vmin.f32 %v1199, %v1204
    %v1279 = vmin.f32 %v1201, %v1204
    %v1288 = vcombine.low %v1272, %v1273
    %v1289 = vcombine.low %v1274, %v1275
    %v1290 = vcombine.low %v1276, %v1277
    %v1291 = vcombine.low %v1278, %v1279
    %v1293 = vunpack.c.l.s4 1966171168
    %v1294 = vunpack.c.0.s8 %v1293
    %v1295 = vlaneseq
    %v1296 = vshrl.u32 %v1295, 7
    %v1297 = vsub.s32 %v1294, %v1296
    %v1298 = vrot.slane %v1288, %v1297
    %v1300 = vunpack.c.l.s4 1966171168
    %v1301 = vunpack.c.0.s8 %v1300
    %v1302 = vlaneseq
    %v1303 = vshrl.u32 %v1302, 7
    %v1304 = vsub.s32 %v1301, %v1303
    %v1305 = vrot.slane %v1289, %v1304
    %v1307 = vunpack.c.l.s4 1966171168
    %v1308 = vunpack.c.0.s8 %v1307
    %v1309 = vlaneseq
    %v1310 = vshrl.u32 %v1309, 7
    %v1311 = vsub.s32 %v1308, %v1310
    %v1312 = vrot.slane %v1290, %v1311
    %v1314 = vunpack.c.l.s4 1966171168
    %v1315 = vunpack.c.0.s8 %v1314
    %v1316 = vlaneseq
    %v1317 = vshrl.u32 %v1316, 7
    %v1318 = vsub.s32 %v1315, %v1317
    %v1319 = vrot.slane %v1291, %v1318
    %v1320 = vcombine.low %v1298, %v1305
    %v1321 = vcombine.low %v1312, %v1319
    %v1323 = vunpack.c.l.s4 1966171168
    %v1324 = vunpack.c.0.s8 %v1323
    %v1325 = vlaneseq
    %v1326 = vshrl.u32 %v1325, 7
    %v1327 = vsub.s32 %v1324, %v1326
    %v1328 = vrot.slane %v1320, %v1327
    %v1330 = vunpack.c.l.s4 1966171168
    %v1331 = vunpack.c.0.s8 %v1330
    %v1332 = vlaneseq
    %v1333 = vshrl.u32 %v1332, 7
    %v1334 = vsub.s32 %v1331, %v1333
    %v1335 = vrot.slane %v1321, %v1334
    %v1336 = vcombine.low %v1328, %v1335
    %1338 = vst [vmem:[#allocation10] sm:$0xff] %v1336
    // Predicated region
    $region30: #{model_forward.1} parent=1 // pred_check
      _
    $region31: #{model_forward.1} parent=1 // pred_check_branch
      %1340 = sbr.rel (0) target = $region33
    $region32: #{model_forward.1} parent=1 // pred_region
      %s1342 = ssub.s32 128, 128
      %1343 = vsyncadd [#allocation5], %s1342
      %s1345 = sshll.u32 [#allocation9], 4
      %s1346 = int_to_ptr.vmem [resolvable:$true] %s1345
      %1348 = dma.vmem_to_hbm [thread:$0]  %s1346, 128, %s4, [#allocation5]
    $region33: #{model_forward.1} parent=1 // pred_fallthru
      _
    // Predicated region
    $region34: #{model_forward.1} parent=1 // pred_check
      _
    $region35: #{model_forward.1} parent=1 // pred_check_branch
      %1350 = sbr.rel (0) target = $region37
    $region36: #{model_forward.1} parent=1 // pred_region
      %s1352 = ssub.s32 128, 128
      %1353 = vsyncadd [#allocation11], %s1352
      %s1355 = sshll.u32 [#allocation10], 4
      %s1356 = int_to_ptr.vmem [resolvable:$true] %s1355
      %1358 = dma.vmem_to_hbm [thread:$0]  %s1356, 128, %s5, [#allocation11]
    $region37: #{model_forward.1} parent=1 // pred_fallthru
      _
    // Predicated region
    $region38: #{model_forward.1} parent=1 // pred_check
      _
    $region39: #{model_forward.1} parent=1 // pred_check_branch
      %1360 = sbr.rel (0) target = $region41
    $region40: #{model_forward.1} parent=1 // pred_region
      %1361 = dma.done [#allocation5], 128
    $region41: #{model_forward.1} parent=1 // pred_fallthru
      _
    // Predicated region
    $region42: #{model_forward.1} parent=1 // pred_check
      _
    $region43: #{model_forward.1} parent=1 // pred_check_branch
      %1363 = sbr.rel (0) target = $region45
    $region44: #{model_forward.1} parent=1 // pred_region
      %1364 = dma.done [#allocation11], 128
    $region45: #{model_forward.1} parent=1 // pred_fallthru
      _
    %1365 = vsyncpa [#allocation4], 1
    %1366 = vsyncpa [#allocation7], 1
    %1367 = vsyncpa [#allocation5], 1
    %1368 = vsyncpa [#allocation11], 1

</llo_original>
